<compile_context>
chip_gen: v6e
topology: v6e:2x2x1
jax: 0.10.0
libtpu: 0.0.40
codegen_flags: <defaults>
</compile_context>

<pallas_src>
import functools

import jax
import jax.numpy as jnp
from jax.experimental import pallas as pl
from jax.experimental.pallas import tpu as pltpu

BN_EPS = 1e-5
LANE = 128
SUBLANE = 8


def _round_up(n, m):
    return ((n + m - 1) // m) * m


# ---------------------------------------------------------------------------
# Fused whole-MLP kernel
# ---------------------------------------------------------------------------
def _make_fused_mlp_kernel(num_layers, relu_mask, scalar_out):
    """Kernel computing all `num_layers` layers on one batch row-tile.

    refs layout: (x_ref, w0, b0, w1, b1, ..., o_ref).
    relu_mask[l] True for hidden layers (Linear + folded BN + ReLU), False for the
    final plain Linear.  If scalar_out, only output column 0 is written, transposed
    into a lane-dense (1, bm) row.
    """

    def kernel(*refs):
        x_ref = refs[0]
        o_ref = refs[-1]
        p_refs = refs[1:-1]
        h = x_ref[...]                              # (bm, K_pad)
        for l in range(num_layers):
            w = p_refs[2 * l][...]                  # (K_pad, N_pad) f32 or bf16
            b = p_refs[2 * l + 1][...]              # (1, N_pad) f32
            hw = h if h.dtype == w.dtype else h.astype(w.dtype)
            y = jnp.dot(hw, w, preferred_element_type=jnp.float32) + b
            h = jnp.maximum(y, 0.0) if relu_mask[l] else y
        if scalar_out:
            # (bm, 1) column -> lane-dense (1, bm) row: XLU transpose, unmasked vst,
            # ~128x less output HBM traffic than writing the padded slab.
            o_ref[...] = jnp.transpose(h[:, :1]).astype(o_ref.dtype)
        else:
            o_ref[...] = h.astype(o_ref.dtype)

    return kernel


# ---------------------------------------------------------------------------
# Wrapper
# ---------------------------------------------------------------------------
@functools.partial(
    jax.jit,
    static_argnames=("relu_mask", "true_out_dim", "bm_max", "x_dtype",
                     "x_buffers", "min_grid_steps"))
def fused_mlp_forward(x, flat_params, *, relu_mask, true_out_dim,
                      bm_max=256, x_dtype=jnp.float32, x_buffers=2,
                      min_grid_steps=1):
    """x: (B, input_dim). flat_params: [w0, b0, w1, b1, ...], 128-lane padded.

    bm_max:         batch row-tile upper bound (sweep 128..512; keep multiple of 8).
    x_dtype:        feed x as f32 or bf16 (bf16 halves x HBM/DMA bytes; f32 accum).
    x_buffers:      pipeline depth for the x tile (2 default, 3 if DMA-latency bound).
    min_grid_steps: set 2 on v7x so both TensorCores get grid steps.
    """
    B, K = x.shape
    Kp = flat_params[0].shape[0]          # padded input dim
    Np = flat_params[-1].shape[1]         # padded output dim (lane-dense, >=128)
    num_layers = len(flat_params) // 2

    # ---- batch row-tile ----------------------------------------------------
    bm = min(bm_max, _round_up(B, SUBLANE))
    if min_grid_steps > 1:
        cap = _round_up(pl.cdiv(B, min_grid_steps), SUBLANE)
        bm = max(SUBLANE, min(bm, cap))
    Bp = _round_up(B, bm)
    grid = Bp // bm

    # ---- compact scalar-output layout (lane-dense (1, Bp)) ------------------
    scalar_out = (true_out_dim == 1) and (grid == 1 or bm % LANE == 0)

    # ---- input pad/cast fast path -------------------------------------------
    # When already aligned, skip the extra XLA pad pass entirely (pad once at
    # data-prep time if you call this repeatedly with ragged shapes).
    if (Bp != B) or (Kp != K):
        xp = jnp.zeros((Bp, Kp), x_dtype).at[:B, :K].set(x.astype(x_dtype))
    else:
        xp = x if x.dtype == x_dtype else x.astype(x_dtype)

    # ---- VMEM budget ---------------------------------------------------------
    param_bytes = sum(p.size * p.dtype.itemsize for p in flat_params)  # Buffered(1)
    x_bytes = bm * Kp * xp.dtype.itemsize * x_buffers
    out_block_elems = bm if scalar_out else bm * Np
    out_bytes = out_block_elems * 4 * 2
    widest = max(max(p.shape[1] for p in flat_params[::2]), Kp)
    act_bytes = 2 * bm * widest * 4                                     # live f32 slabs
    budget = param_bytes + x_bytes + out_bytes + act_bytes
    if budget > (100 << 20):
        raise ValueError(
            f"fused MLP needs ~{budget/2**20:.0f} MiB VMEM; does not fit resident "
            "(v7x has 64 MiB/TC). Use bf16 weights (prepare_params(..., jnp.bfloat16)), "
            "lower bm_max, or split the widest layer across an extra grid axis.")
    vmem_limit = int(min(max(budget * 5 // 4 + (2 << 20), 16 << 20), 100 << 20))

    # ---- specs ---------------------------------------------------------------
    in_specs = [pl.BlockSpec((bm, Kp), lambda i: (i, 0),
                             pipeline_mode=pl.Buffered(x_buffers))]
    for p in flat_params:
        # Constant index_map -> VMEM-resident; single buffer (no re-fetch ever).
        in_specs.append(pl.BlockSpec(p.shape, lambda i: (0, 0),
                                     pipeline_mode=pl.Buffered(1)))

    if scalar_out:
        out_shape = jax.ShapeDtypeStruct((1, Bp), jnp.float32)
        out_spec = pl.BlockSpec((1, bm), lambda i: (0, i))
    else:
        out_shape = jax.ShapeDtypeStruct((Bp, Np), jnp.float32)
        out_spec = pl.BlockSpec((bm, Np), lambda i: (i, 0))

    out = pl.pallas_call(
        _make_fused_mlp_kernel(num_layers, relu_mask, scalar_out),
        out_shape=out_shape,
        grid_spec=pltpu.PrefetchScalarGridSpec(
            num_scalar_prefetch=0,
            grid=(grid,),
            in_specs=in_specs,
            out_specs=out_spec,
        ),
        compiler_params=pltpu.CompilerParams(
            dimension_semantics=("parallel",),
            vmem_limit_bytes=vmem_limit),
    )(xp, *flat_params)

    if scalar_out:
        return out[0, :B].reshape(B, 1)
    return out[:B, :true_out_dim]


# ---------------------------------------------------------------------------
# Parameter init (mirrors PyTorch defaults) and BN-fold + lane padding
# ---------------------------------------------------------------------------
def init_mlp_params(key, input_dim, embed_dims, output_layer=True):
    """Linear: U(-1/sqrt(fan_in), 1/sqrt(fan_in)); BN: gamma=1, beta=0, mean=0, var=1."""
    params = []
    in_dim = input_dim
    for embed_dim in embed_dims:
        key, kw, kb = jax.random.split(key, 3)
        bound = 1.0 / jnp.sqrt(float(in_dim))
        w = jax.random.uniform(kw, (in_dim, embed_dim), jnp.float32, -bound, bound)
        b = jax.random.uniform(kb, (1, embed_dim), jnp.float32, -bound, bound)
        params.append(dict(w=w, b=b,
                           gamma=jnp.ones((1, embed_dim), jnp.float32),
                           beta=jnp.zeros((1, embed_dim), jnp.float32),
                           mean=jnp.zeros((1, embed_dim), jnp.float32),
                           var=jnp.ones((1, embed_dim), jnp.float32)))
        in_dim = embed_dim
    out_params = None
    if output_layer:
        key, kw, kb = jax.random.split(key, 3)
        bound = 1.0 / jnp.sqrt(float(in_dim))
        w = jax.random.uniform(kw, (in_dim, 1), jnp.float32, -bound, bound)
        b = jax.random.uniform(kb, (1, 1), jnp.float32, -bound, bound)
        out_params = dict(w=w, b=b)
    return params, out_params


def prepare_params(layer_params, out_params, compute_dtype=jnp.float32):
    """Fold BN into Linear, zero-pad every dim up to a multiple of 128 lanes.

    Returns (flat_params, relu_mask, true_output_dim). Weights are cast to
    `compute_dtype` (f32 or bf16); biases stay f32 (f32 epilogue).
    NOTE: the folded gamma*rsqrt(var+eps) scale is baked into the weights before the
    bf16 cast; if running var is tiny (large folded scale) keep compute_dtype=f32.
    """
    flat, relu_mask = [], []
    true_out = layer_params[-1]["w"].shape[1] if layer_params else None
    for p in layer_params:
        scale = p["gamma"] * jax.lax.rsqrt(p["var"] + BN_EPS)        # (1, N)
        w = p["w"] * scale                                            # (K, N)
        b = (p["b"] - p["mean"]) * scale + p["beta"]                  # (1, N)
        K, N = w.shape
        Kp, Npad = _round_up(K, LANE), _round_up(N, LANE)
        wp = jnp.zeros((Kp, Npad), jnp.float32).at[:K, :N].set(w).astype(compute_dtype)
        bp = jnp.zeros((1, Npad), jnp.float32).at[:, :N].set(b)
        flat += [wp, bp]
        relu_mask.append(True)
        true_out = N
    if out_params is not None:
        w, b = out_params["w"], out_params["b"]
        K, N = w.shape
        Kp, Npad = _round_up(K, LANE), _round_up(N, LANE)
        wp = jnp.zeros((Kp, Npad), jnp.float32).at[:K, :N].set(w).astype(compute_dtype)
        bp = jnp.zeros((1, Npad), jnp.float32).at[:, :N].set(b)
        flat += [wp, bp]
        relu_mask.append(False)
        true_out = N
    return flat, tuple(relu_mask), true_out


# ---------------------------------------------------------------------------
# Pure-JAX reference (unfolded BN, unpadded)
# ---------------------------------------------------------------------------
def _reference_forward(x, layer_params, out_params):
    h = x
    for p in layer_params:
        y = h @ p["w"] + p["b"]
        y = (y - p["mean"]) * jax.lax.rsqrt(p["var"] + BN_EPS) * p["gamma"] + p["beta"]
        h = jnp.maximum(y, 0.0)
    if out_params is not None:
        h = h @ out_params["w"] + out_params["b"]
    return h


if __name__ == "__main__":
    key = jax.random.PRNGKey(0)
    batch = 8
    input_dim = 32
    embed_dims = (64, 32)
    # dropout = 0.2 -> identity in inference mode

    key, kx, kp = jax.random.split(key, 3)
    x = jax.random.normal(kx, (batch, input_dim), jnp.float32)
    layer_params, out_params = init_mlp_params(kp, input_dim, embed_dims,
                                               output_layer=True)
    ref = _reference_forward(x, layer_params, out_params)

    # f32 path: exact check against reference.
    flat_f32, relu_mask, true_out = prepare_params(layer_params, out_params,
                                                   jnp.float32)
    out_f32 = fused_mlp_forward(x, flat_f32, relu_mask=relu_mask,
                                true_out_dim=true_out)
    out_f32 = jax.block_until_ready(out_f32)
    assert out_f32.shape == (batch, 1), out_f32.shape
    assert jnp.allclose(out_f32, ref, atol=1e-4, rtol=1e-4), "f32 mismatch vs reference"

    # bf16 weights + bf16 x feed (v6e/v7x MXU path), f32 accumulation + epilogue.
    flat_bf16, relu_mask_b, true_out_b = prepare_params(layer_params, out_params,
                                                        jnp.bfloat16)
    out_bf16 = fused_mlp_forward(x, flat_bf16, relu_mask=relu_mask_b,
                                 true_out_dim=true_out_b, x_dtype=jnp.bfloat16)
    out_bf16 = jax.block_until_ready(out_bf16)
    assert out_bf16.shape == (batch, 1), out_bf16.shape
    assert jnp.allclose(out_bf16, ref, atol=1e-1, rtol=1e-1), "bf16 mismatch vs reference"

    print("KERNEL_OK")
</pallas_src>

<mosaic_0001>
module attributes {stable_mosaic.version = 11 : i64} {
  func.func @kernel(%arg0: i32, %arg1: memref<8x128xf32, #tpu.memory_space<vmem>>, %arg2: memref<128x128xf32, #tpu.memory_space<vmem>>, %arg3: memref<1x128xf32, #tpu.memory_space<vmem>>, %arg4: memref<128x128xf32, #tpu.memory_space<vmem>>, %arg5: memref<1x128xf32, #tpu.memory_space<vmem>>, %arg6: memref<128x128xf32, #tpu.memory_space<vmem>>, %arg7: memref<1x128xf32, #tpu.memory_space<vmem>>, %arg8: memref<1x8xf32, #tpu.memory_space<vmem>>) attributes {dimension_semantics = [#tpu.dimension_semantics<parallel>], iteration_bounds = array<i64: 1>, scalar_prefetch = 0 : i64, scratch_operands = 0 : i64, tpu.core_type = #tpu.core_type<tc>, window_params = [{pipeline_mode = #tpu.pipeline_mode<double_buffered>, transform_indices = @transform_0, window_bounds = array<i64: 8, 128>}, {pipeline_mode = #tpu.pipeline_mode<synchronous>, transform_indices = @transform_1, window_bounds = array<i64: 128, 128>}, {pipeline_mode = #tpu.pipeline_mode<synchronous>, transform_indices = @transform_2, window_bounds = array<i64: 1, 128>}, {pipeline_mode = #tpu.pipeline_mode<synchronous>, transform_indices = @transform_3, window_bounds = array<i64: 128, 128>}, {pipeline_mode = #tpu.pipeline_mode<synchronous>, transform_indices = @transform_4, window_bounds = array<i64: 1, 128>}, {pipeline_mode = #tpu.pipeline_mode<synchronous>, transform_indices = @transform_5, window_bounds = array<i64: 128, 128>}, {pipeline_mode = #tpu.pipeline_mode<synchronous>, transform_indices = @transform_6, window_bounds = array<i64: 1, 128>}, {transform_indices = @transform_7, window_bounds = array<i64: 1, 8>}]} {
    %c0 = arith.constant 0 : index
    %c0_0 = arith.constant 0 : index
    %0 = vector.load %arg1[%c0, %c0_0] : memref<8x128xf32, #tpu.memory_space<vmem>>, vector<8x128xf32>
    %c0_1 = arith.constant 0 : index
    %c0_2 = arith.constant 0 : index
    %1 = vector.load %arg2[%c0_1, %c0_2] : memref<128x128xf32, #tpu.memory_space<vmem>>, vector<128x128xf32>
    %c0_3 = arith.constant 0 : index
    %c0_4 = arith.constant 0 : index
    %2 = vector.load %arg3[%c0_3, %c0_4] : memref<1x128xf32, #tpu.memory_space<vmem>>, vector<1x128xf32>
    %cst = arith.constant dense<0.000000e+00> : vector<8x128xf32>
    %3 = tpu.matmul %0, %1, %cst {dimension_numbers = #tpu.dot_dimension_numbers<[1], [0], [0], [1], [0, 0, 1, 1], [], []>} : vector<8x128xf32>, vector<128x128xf32>, vector<8x128xf32> -> vector<8x128xf32>
    %4 = vector.broadcast %2 : vector<1x128xf32> to vector<8x128xf32>
    %5 = arith.addf %3, %4 : vector<8x128xf32>
    %cst_5 = arith.constant 0.000000e+00 : f32
    %6 = vector.broadcast %cst_5 : f32 to vector<8x128xf32>
    %7 = arith.maximumf %5, %6 : vector<8x128xf32>
    %c0_6 = arith.constant 0 : index
    %c0_7 = arith.constant 0 : index
    %8 = vector.load %arg4[%c0_6, %c0_7] : memref<128x128xf32, #tpu.memory_space<vmem>>, vector<128x128xf32>
    %c0_8 = arith.constant 0 : index
    %c0_9 = arith.constant 0 : index
    %9 = vector.load %arg5[%c0_8, %c0_9] : memref<1x128xf32, #tpu.memory_space<vmem>>, vector<1x128xf32>
    %cst_10 = arith.constant dense<0.000000e+00> : vector<8x128xf32>
    %10 = tpu.matmul %7, %8, %cst_10 {dimension_numbers = #tpu.dot_dimension_numbers<[1], [0], [0], [1], [0, 0, 1, 1], [], []>} : vector<8x128xf32>, vector<128x128xf32>, vector<8x128xf32> -> vector<8x128xf32>
    %11 = vector.broadcast %9 : vector<1x128xf32> to vector<8x128xf32>
    %12 = arith.addf %10, %11 : vector<8x128xf32>
    %cst_11 = arith.constant 0.000000e+00 : f32
    %13 = vector.broadcast %cst_11 : f32 to vector<8x128xf32>
    %14 = arith.maximumf %12, %13 : vector<8x128xf32>
    %c0_12 = arith.constant 0 : index
    %c0_13 = arith.constant 0 : index
    %15 = vector.load %arg6[%c0_12, %c0_13] : memref<128x128xf32, #tpu.memory_space<vmem>>, vector<128x128xf32>
    %c0_14 = arith.constant 0 : index
    %c0_15 = arith.constant 0 : index
    %16 = vector.load %arg7[%c0_14, %c0_15] : memref<1x128xf32, #tpu.memory_space<vmem>>, vector<1x128xf32>
    %cst_16 = arith.constant dense<0.000000e+00> : vector<8x128xf32>
    %17 = tpu.matmul %14, %15, %cst_16 {dimension_numbers = #tpu.dot_dimension_numbers<[1], [0], [0], [1], [0, 0, 1, 1], [], []>} : vector<8x128xf32>, vector<128x128xf32>, vector<8x128xf32> -> vector<8x128xf32>
    %18 = vector.broadcast %16 : vector<1x128xf32> to vector<8x128xf32>
    %19 = arith.addf %17, %18 : vector<8x128xf32>
    %20 = vector.extract_strided_slice %19 {offsets = [0, 0], sizes = [8, 1], strides = [1, 1]} : vector<8x128xf32> to vector<8x1xf32>
    %21 = tpu.transpose %20, [1, 0] : vector<8x1xf32> -> vector<1x8xf32>
    %c0_17 = arith.constant 0 : index
    %c0_18 = arith.constant 0 : index
    %22 = vector.load %arg8[%c0_17, %c0_18] : memref<1x8xf32, #tpu.memory_space<vmem>>, vector<1x8xf32>
    tpu.vector_store %arg8[%c0_17, %c0_18], %21 {strides = array<i32>} : memref<1x8xf32, #tpu.memory_space<vmem>>, vector<1x8xf32>,
    return
  }
  func.func @transform_0(%arg0: i32) -> (i32, i32) {
    %c0_i32 = arith.constant 0 : i32
    %c0_i32_0 = arith.constant 0 : i32
    return %arg0, %c0_i32 : i32, i32
  }
  func.func @transform_1(%arg0: i32) -> (i32, i32) {
    %c0_i32 = arith.constant 0 : i32
    %c0_i32_0 = arith.constant 0 : i32
    %c0_i32_1 = arith.constant 0 : i32
    return %c0_i32, %c0_i32_0 : i32, i32
  }
  func.func @transform_2(%arg0: i32) -> (i32, i32) {
    %c0_i32 = arith.constant 0 : i32
    %c0_i32_0 = arith.constant 0 : i32
    %c0_i32_1 = arith.constant 0 : i32
    return %c0_i32, %c0_i32_0 : i32, i32
  }
  func.func @transform_3(%arg0: i32) -> (i32, i32) {
    %c0_i32 = arith.constant 0 : i32
    %c0_i32_0 = arith.constant 0 : i32
    %c0_i32_1 = arith.constant 0 : i32
    return %c0_i32, %c0_i32_0 : i32, i32
  }
  func.func @transform_4(%arg0: i32) -> (i32, i32) {
    %c0_i32 = arith.constant 0 : i32
    %c0_i32_0 = arith.constant 0 : i32
    %c0_i32_1 = arith.constant 0 : i32
    return %c0_i32, %c0_i32_0 : i32, i32
  }
  func.func @transform_5(%arg0: i32) -> (i32, i32) {
    %c0_i32 = arith.constant 0 : i32
    %c0_i32_0 = arith.constant 0 : i32
    %c0_i32_1 = arith.constant 0 : i32
    return %c0_i32, %c0_i32_0 : i32, i32
  }
  func.func @transform_6(%arg0: i32) -> (i32, i32) {
    %c0_i32 = arith.constant 0 : i32
    %c0_i32_0 = arith.constant 0 : i32
    %c0_i32_1 = arith.constant 0 : i32
    return %c0_i32, %c0_i32_0 : i32, i32
  }
  func.func @transform_7(%arg0: i32) -> (i32, i32) {
    %c0_i32 = arith.constant 0 : i32
    %c0_i32_0 = arith.constant 0 : i32
    return %c0_i32, %arg0 : i32, i32
  }
}

</mosaic_0001>

<llo_original>
// kernel: fused_mlp_forward.1
$region0: #{fused_mlp_forward.1}
  #allocation0 [shape = 'u32[]', space=smem, size = 0x4, offset = 0x4, fixed_abs, tag = 'smem constant byte address 0x4 - core index']
  #allocation1 [shape = 'u32[144,128]{1,0:T(1,128)}', space=vmem, size = 0x12000, scoped, tag = 'internal scratch']
  %s0 = inlined_call_operand.vmem [shape: f32[8,128], index: 0, kind: input, shape index: {}]
  %s1 = inlined_call_operand.hbm [shape: f32[128,128], index: 1, kind: input, shape index: {}]
  %s2 = inlined_call_operand.vmem [shape: f32[1,128], index: 2, kind: input, shape index: {}]
  %s3 = inlined_call_operand.hbm [shape: f32[128,128], index: 3, kind: input, shape index: {}]
  %s4 = inlined_call_operand.vmem [shape: f32[1,128], index: 4, kind: input, shape index: {}]
  %s5 = inlined_call_operand.hbm [shape: f32[128,128], index: 5, kind: input, shape index: {}]
  %s6 = inlined_call_operand.vmem [shape: f32[1,128], index: 6, kind: input, shape index: {}]
  %s7 = inlined_call_operand.hbm [shape: f32[1,8], index: 7, kind: output, shape index: {}]
  %s8 = sld [smem:[#allocation0]]
  $region50: #{fused_mlp_forward.1} parent=0
    _
  %s10 = ssub.s32 1, %s8
  %s11 = scalar_select 0, %s10, %s8
  $region1: #{fused_mlp_forward.1} parent=0
    #allocation2 [shape = 'u8[65536]{0}', space=vmem, size = 0x10000, scoped, tag = 'input window, operand 1, single buffered']
    #allocation3 [shape = 's32[1]{0}', space=sflag, size = 0x4, scoped, tag = 'scoped memory for fused_mlp_forward.1']
    #allocation4 [shape = 's32[1]{0}', space=sflag, size = 0x4, scoped, tag = 'scoped memory for fused_mlp_forward.1']
    #allocation5 [shape = 'u8[65536]{0}', space=vmem, size = 0x10000, scoped, tag = 'input window, operand 3, single buffered']
    #allocation6 [shape = 's32[1]{0}', space=sflag, size = 0x4, scoped, tag = 'scoped memory for fused_mlp_forward.1']
    #allocation7 [shape = 'u8[65536]{0}', space=vmem, size = 0x10000, scoped, tag = 'input window, operand 5, single buffered']
    #allocation8 [shape = 'u8[512]{0}', space=vmem, size = 0x400, scoped, tag = 'output window, operand 0, single buffered']
    %12 = vsyncpa [#allocation3], 0
    %13 = vsyncpa [#allocation6], 0
    %14 = vsyncpa [#allocation4], 0
    // Predicated region
    $region2: #{fused_mlp_forward.1} parent=1 // pred_check
      _
    $region3: #{fused_mlp_forward.1} parent=1 // pred_check_branch
      %16 = sbr.rel (0) target = $region5
    $region4: #{fused_mlp_forward.1} parent=1 // pred_region
      _
    $region5: #{fused_mlp_forward.1} parent=1 // pred_fallthru
      _
    // Predicated region
    $region6: #{fused_mlp_forward.1} parent=1 // pred_check
      _
    $region7: #{fused_mlp_forward.1} parent=1 // pred_check_branch
      %18 = sbr.rel (0) target = $region9
    $region8: #{fused_mlp_forward.1} parent=1 // pred_region
      %s20 = ssub.s32 2048, 2048
      %21 = vsyncadd [#allocation3], %s20
      %s22 = sshll.u32 [#allocation2], 4
      %s23 = int_to_ptr.vmem [resolvable:$true] %s22
      %28 = dma.hbm_to_vmem [thread:$0]  %s1, 2048, %s23, [#allocation3], 128, 128, 8
    $region9: #{fused_mlp_forward.1} parent=1 // pred_fallthru
      _
    // Predicated region
    $region10: #{fused_mlp_forward.1} parent=1 // pred_check
      _
    $region11: #{fused_mlp_forward.1} parent=1 // pred_check_branch
      %30 = sbr.rel (0) target = $region13
    $region12: #{fused_mlp_forward.1} parent=1 // pred_region
      _
    $region13: #{fused_mlp_forward.1} parent=1 // pred_fallthru
      _
    // Predicated region
    $region14: #{fused_mlp_forward.1} parent=1 // pred_check
      _
    $region15: #{fused_mlp_forward.1} parent=1 // pred_check_branch
      %32 = sbr.rel (0) target = $region17
    $region16: #{fused_mlp_forward.1} parent=1 // pred_region
      %s34 = ssub.s32 2048, 2048
      %35 = vsyncadd [#allocation6], %s34
      %s36 = sshll.u32 [#allocation5], 4
      %s37 = int_to_ptr.vmem [resolvable:$true] %s36
      %42 = dma.hbm_to_vmem [thread:$0]  %s3, 2048, %s37, [#allocation6], 128, 128, 8
    $region17: #{fused_mlp_forward.1} parent=1 // pred_fallthru
      _
    // Predicated region
    $region18: #{fused_mlp_forward.1} parent=1 // pred_check
      _
    $region19: #{fused_mlp_forward.1} parent=1 // pred_check_branch
      %44 = sbr.rel (0) target = $region21
    $region20: #{fused_mlp_forward.1} parent=1 // pred_region
      _
    $region21: #{fused_mlp_forward.1} parent=1 // pred_fallthru
      _
    // Predicated region
    $region22: #{fused_mlp_forward.1} parent=1 // pred_check
      _
    $region23: #{fused_mlp_forward.1} parent=1 // pred_check_branch
      %46 = sbr.rel (0) target = $region25
    $region24: #{fused_mlp_forward.1} parent=1 // pred_region
      %s48 = ssub.s32 2048, 2048
      %49 = vsyncadd [#allocation6], %s48
      %s50 = sshll.u32 [#allocation7], 4
      %s51 = int_to_ptr.vmem [resolvable:$true] %s50
      %56 = dma.hbm_to_vmem [thread:$0]  %s5, 2048, %s51, [#allocation6], 128, 128, 8
    $region25: #{fused_mlp_forward.1} parent=1 // pred_fallthru
      _
    // Predicated region
    $region26: #{fused_mlp_forward.1} parent=1 // pred_check
      _
    $region27: #{fused_mlp_forward.1} parent=1 // pred_check_branch
      %58 = sbr.rel (0) target = $region29
    $region28: #{fused_mlp_forward.1} parent=1 // pred_region
      _
    $region29: #{fused_mlp_forward.1} parent=1 // pred_fallthru
      _
    // Predicated region
    $region30: #{fused_mlp_forward.1} parent=1 // pred_check
      _
    $region31: #{fused_mlp_forward.1} parent=1 // pred_check_branch
      %60 = sbr.rel (0) target = $region33
    $region32: #{fused_mlp_forward.1} parent=1 // pred_region
      %61 = dma.done [#allocation3], 2048
    $region33: #{fused_mlp_forward.1} parent=1 // pred_fallthru
      _
    // Predicated region
    $region34: #{fused_mlp_forward.1} parent=1 // pred_check
      _
    $region35: #{fused_mlp_forward.1} parent=1 // pred_check_branch
      %63 = sbr.rel (0) target = $region37
    $region36: #{fused_mlp_forward.1} parent=1 // pred_region
      %64 = dma.done [#allocation6], 2048
    $region37: #{fused_mlp_forward.1} parent=1 // pred_fallthru
      _
    // Predicated region
    $region38: #{fused_mlp_forward.1} parent=1 // pred_check
      _
    $region39: #{fused_mlp_forward.1} parent=1 // pred_check_branch
      %66 = sbr.rel (0) target = $region41
    $region40: #{fused_mlp_forward.1} parent=1 // pred_region
      %67 = dma.done [#allocation6], 2048
    $region41: #{fused_mlp_forward.1} parent=1 // pred_fallthru
      _
    %v68 = vld [vmem:[%s0] sm:$0xff]
    %v69 = vld [vmem:[#allocation2] sm:$0xff]
    %v70 = vld [vmem:[#allocation2 + $0x8] sm:$0xff]
    %v71 = vld [vmem:[#allocation2 + $0x10] sm:$0xff]
    %v72 = vld [vmem:[#allocation2 + $0x18] sm:$0xff]
    %v73 = vld [vmem:[#allocation2 + $0x20] sm:$0xff]
    %v74 = vld [vmem:[#allocation2 + $0x28] sm:$0xff]
    %v75 = vld [vmem:[#allocation2 + $0x30] sm:$0xff]
    %v76 = vld [vmem:[#allocation2 + $0x38] sm:$0xff]
    %v77 = vld [vmem:[#allocation2 + $0x40] sm:$0xff]
    %v78 = vld [vmem:[#allocation2 + $0x48] sm:$0xff]
    %v79 = vld [vmem:[#allocation2 + $0x50] sm:$0xff]
    %v80 = vld [vmem:[#allocation2 + $0x58] sm:$0xff]
    %v81 = vld [vmem:[#allocation2 + $0x60] sm:$0xff]
    %v82 = vld [vmem:[#allocation2 + $0x68] sm:$0xff]
    %v83 = vld [vmem:[#allocation2 + $0x70] sm:$0xff]
    %v84 = vld [vmem:[#allocation2 + $0x78] sm:$0xff]
    %v85 = vld [vmem:[%s2] sm:$0x1]
    %v87 = vlaneseq
    %v88 = vshrl.u32 %v87, 7
    %v89 = vsub.s32 0, %v88
    %v90 = vrot.slane %v85, %v89
    %92 = vmatprep.subr.mxu0 0.0
    %93 = vmatpush1.msra.mxu0 %v84
    %94 = vmatprep.subr.mxu0 0.0
    %95 = vmatpush1.msra.mxu0 %v83
    %96 = vmatprep.subr.mxu0 0.0
    %97 = vmatpush1.msra.mxu0 %v82
    %98 = vmatprep.subr.mxu0 0.0
    %99 = vmatpush1.msra.mxu0 %v81
    %100 = vmatprep.subr.mxu0 0.0
    %101 = vmatpush1.msra.mxu0 %v80
    %102 = vmatprep.subr.mxu0 0.0
    %103 = vmatpush1.msra.mxu0 %v79
    %104 = vmatprep.subr.mxu0 0.0
    %105 = vmatpush1.msra.mxu0 %v78
    %106 = vmatprep.subr.mxu0 0.0
    %107 = vmatpush1.msra.mxu0 %v77
    %108 = vmatprep.subr.mxu0 0.0
    %109 = vmatpush1.msra.mxu0 %v76
    %110 = vmatprep.subr.mxu0 0.0
    %111 = vmatpush1.msra.mxu0 %v75
    %112 = vmatprep.subr.mxu0 0.0
    %113 = vmatpush1.msra.mxu0 %v74
    %114 = vmatprep.subr.mxu0 0.0
    %115 = vmatpush1.msra.mxu0 %v73
    %116 = vmatprep.subr.mxu0 0.0
    %117 = vmatpush1.msra.mxu0 %v72
    %118 = vmatprep.subr.mxu0 0.0
    %119 = vmatpush1.msra.mxu0 %v71
    %120 = vmatprep.subr.mxu0 0.0
    %121 = vmatpush1.msra.mxu0 %v70
    %122 = vmatprep.subr.mxu0 0.0
    %123 = vmatpush1.msra.mxu0 %v69
    %124 = vmatprep.subr.mxu0 0.0
    %125 = vmatpush2.msra.mxu0 0.0
    %126 = vmatprep.subr.mxu0 0.0
    %127 = vmatpush2.msra.mxu0 0.0
    %128 = vmatprep.subr.mxu0 0.0
    %129 = vmatpush2.msra.mxu0 0.0
    %130 = vmatprep.subr.mxu0 0.0
    %131 = vmatpush2.msra.mxu0 0.0
    %132 = vmatprep.subr.mxu0 0.0
    %133 = vmatpush2.msra.mxu0 0.0
    %134 = vmatprep.subr.mxu0 0.0
    %135 = vmatpush2.msra.mxu0 0.0
    %136 = vmatprep.subr.mxu0 0.0
    %137 = vmatpush2.msra.mxu0 0.0
    %138 = vmatprep.subr.mxu0 0.0
    %139 = vmatpush2.msra.mxu0 0.0
    %140 = vmatprep.subr.mxu0 0.0
    %141 = vmatpush2.msra.mxu0 0.0
    %142 = vmatprep.subr.mxu0 0.0
    %143 = vmatpush2.msra.mxu0 0.0
    %144 = vmatprep.subr.mxu0 0.0
    %145 = vmatpush2.msra.mxu0 0.0
    %146 = vmatprep.subr.mxu0 0.0
    %147 = vmatpush2.msra.mxu0 0.0
    %148 = vmatprep.subr.mxu0 0.0
    %149 = vmatpush2.msra.mxu0 0.0
    %150 = vmatprep.subr.mxu0 0.0
    %151 = vmatpush2.msra.mxu0 0.0
    %152 = vmatprep.subr.mxu0 0.0
    %153 = vmatpush2.msra.mxu0 0.0
    %154 = vmatprep.subr.mxu0 0.0
    %155 = vmatpush2.msra.mxu0 0.0
    %156 = vmatprep.mubr.f32.mxu0 0.0
    %157 = vmatmul.mubr.f32.gmra.mxu0 %v68
    %v158 = vpop.f32.mrf.mxu0
    %v159 = vadd.f32 %v90, %v158
    %v160 = vpop.f32.mrf.mxu0
    %161 = vdwg.mxu0
    %v162 = vmax.f32 %v159, 0.0
    %v163 = vld [vmem:[#allocation5] sm:$0xff]
    %v164 = vld [vmem:[#allocation5 + $0x8] sm:$0xff]
    %v165 = vld [vmem:[#allocation5 + $0x10] sm:$0xff]
    %v166 = vld [vmem:[#allocation5 + $0x18] sm:$0xff]
    %v167 = vld [vmem:[#allocation5 + $0x20] sm:$0xff]
    %v168 = vld [vmem:[#allocation5 + $0x28] sm:$0xff]
    %v169 = vld [vmem:[#allocation5 + $0x30] sm:$0xff]
    %v170 = vld [vmem:[#allocation5 + $0x38] sm:$0xff]
    %v171 = vld [vmem:[#allocation5 + $0x40] sm:$0xff]
    %v172 = vld [vmem:[#allocation5 + $0x48] sm:$0xff]
    %v173 = vld [vmem:[#allocation5 + $0x50] sm:$0xff]
    %v174 = vld [vmem:[#allocation5 + $0x58] sm:$0xff]
    %v175 = vld [vmem:[#allocation5 + $0x60] sm:$0xff]
    %v176 = vld [vmem:[#allocation5 + $0x68] sm:$0xff]
    %v177 = vld [vmem:[#allocation5 + $0x70] sm:$0xff]
    %v178 = vld [vmem:[#allocation5 + $0x78] sm:$0xff]
    %v179 = vld [vmem:[%s4] sm:$0x1]
    %v181 = vlaneseq
    %v182 = vshrl.u32 %v181, 7
    %v183 = vsub.s32 0, %v182
    %v184 = vrot.slane %v179, %v183
    %186 = vmatprep.subr.mxu0 0.0
    %187 = vmatpush1.msra.mxu0 %v178
    %188 = vmatprep.subr.mxu0 0.0
    %189 = vmatpush1.msra.mxu0 %v177
    %190 = vmatprep.subr.mxu0 0.0
    %191 = vmatpush1.msra.mxu0 %v176
    %192 = vmatprep.subr.mxu0 0.0
    %193 = vmatpush1.msra.mxu0 %v175
    %194 = vmatprep.subr.mxu0 0.0
    %195 = vmatpush1.msra.mxu0 %v174
    %196 = vmatprep.subr.mxu0 0.0
    %197 = vmatpush1.msra.mxu0 %v173
    %198 = vmatprep.subr.mxu0 0.0
    %199 = vmatpush1.msra.mxu0 %v172
    %200 = vmatprep.subr.mxu0 0.0
    %201 = vmatpush1.msra.mxu0 %v171
    %202 = vmatprep.subr.mxu0 0.0
    %203 = vmatpush1.msra.mxu0 %v170
    %204 = vmatprep.subr.mxu0 0.0
    %205 = vmatpush1.msra.mxu0 %v169
    %206 = vmatprep.subr.mxu0 0.0
    %207 = vmatpush1.msra.mxu0 %v168
    %208 = vmatprep.subr.mxu0 0.0
    %209 = vmatpush1.msra.mxu0 %v167
    %210 = vmatprep.subr.mxu0 0.0
    %211 = vmatpush1.msra.mxu0 %v166
    %212 = vmatprep.subr.mxu0 0.0
    %213 = vmatpush1.msra.mxu0 %v165
    %214 = vmatprep.subr.mxu0 0.0
    %215 = vmatpush1.msra.mxu0 %v164
    %216 = vmatprep.subr.mxu0 0.0
    %217 = vmatpush1.msra.mxu0 %v163
    %218 = vmatprep.subr.mxu0 0.0
    %219 = vmatpush2.msra.mxu0 0.0
    %220 = vmatprep.subr.mxu0 0.0
    %221 = vmatpush2.msra.mxu0 0.0
    %222 = vmatprep.subr.mxu0 0.0
    %223 = vmatpush2.msra.mxu0 0.0
    %224 = vmatprep.subr.mxu0 0.0
    %225 = vmatpush2.msra.mxu0 0.0
    %226 = vmatprep.subr.mxu0 0.0
    %227 = vmatpush2.msra.mxu0 0.0
    %228 = vmatprep.subr.mxu0 0.0
    %229 = vmatpush2.msra.mxu0 0.0
    %230 = vmatprep.subr.mxu0 0.0
    %231 = vmatpush2.msra.mxu0 0.0
    %232 = vmatprep.subr.mxu0 0.0
    %233 = vmatpush2.msra.mxu0 0.0
    %234 = vmatprep.subr.mxu0 0.0
    %235 = vmatpush2.msra.mxu0 0.0
    %236 = vmatprep.subr.mxu0 0.0
    %237 = vmatpush2.msra.mxu0 0.0
    %238 = vmatprep.subr.mxu0 0.0
    %239 = vmatpush2.msra.mxu0 0.0
    %240 = vmatprep.subr.mxu0 0.0
    %241 = vmatpush2.msra.mxu0 0.0
    %242 = vmatprep.subr.mxu0 0.0
    %243 = vmatpush2.msra.mxu0 0.0
    %244 = vmatprep.subr.mxu0 0.0
    %245 = vmatpush2.msra.mxu0 0.0
    %246 = vmatprep.subr.mxu0 0.0
    %247 = vmatpush2.msra.mxu0 0.0
    %248 = vmatprep.subr.mxu0 0.0
    %249 = vmatpush2.msra.mxu0 0.0
    %250 = vmatprep.mubr.f32.mxu0 0.0
    %251 = vmatmul.mubr.f32.gmra.mxu0 %v162
    %v252 = vpop.f32.mrf.mxu0
    %v253 = vadd.f32 %v184, %v252
    %v254 = vpop.f32.mrf.mxu0
    %255 = vdwg.mxu0
    %v256 = vmax.f32 %v253, 0.0
    %v257 = vld [vmem:[#allocation7] sm:$0xff]
    %v258 = vld [vmem:[#allocation7 + $0x8] sm:$0xff]
    %v259 = vld [vmem:[#allocation7 + $0x10] sm:$0xff]
    %v260 = vld [vmem:[#allocation7 + $0x18] sm:$0xff]
    %v261 = vld [vmem:[#allocation7 + $0x20] sm:$0xff]
    %v262 = vld [vmem:[#allocation7 + $0x28] sm:$0xff]
    %v263 = vld [vmem:[#allocation7 + $0x30] sm:$0xff]
    %v264 = vld [vmem:[#allocation7 + $0x38] sm:$0xff]
    %v265 = vld [vmem:[#allocation7 + $0x40] sm:$0xff]
    %v266 = vld [vmem:[#allocation7 + $0x48] sm:$0xff]
    %v267 = vld [vmem:[#allocation7 + $0x50] sm:$0xff]
    %v268 = vld [vmem:[#allocation7 + $0x58] sm:$0xff]
    %v269 = vld [vmem:[#allocation7 + $0x60] sm:$0xff]
    %v270 = vld [vmem:[#allocation7 + $0x68] sm:$0xff]
    %v271 = vld [vmem:[#allocation7 + $0x70] sm:$0xff]
    %v272 = vld [vmem:[#allocation7 + $0x78] sm:$0xff]
    %v273 = vld [vmem:[%s6] sm:$0x1]
    %v275 = vlaneseq
    %v276 = vshrl.u32 %v275, 7
    %v277 = vsub.s32 0, %v276
    %v278 = vrot.slane %v273, %v277
    %280 = vmatprep.subr.mxu0 0.0
    %281 = vmatpush1.msra.mxu0 %v272
    %282 = vmatprep.subr.mxu0 0.0
    %283 = vmatpush1.msra.mxu0 %v271
    %284 = vmatprep.subr.mxu0 0.0
    %285 = vmatpush1.msra.mxu0 %v270
    %286 = vmatprep.subr.mxu0 0.0
    %287 = vmatpush1.msra.mxu0 %v269
    %288 = vmatprep.subr.mxu0 0.0
    %289 = vmatpush1.msra.mxu0 %v268
    %290 = vmatprep.subr.mxu0 0.0
    %291 = vmatpush1.msra.mxu0 %v267
    %292 = vmatprep.subr.mxu0 0.0
    %293 = vmatpush1.msra.mxu0 %v266
    %294 = vmatprep.subr.mxu0 0.0
    %295 = vmatpush1.msra.mxu0 %v265
    %296 = vmatprep.subr.mxu0 0.0
    %297 = vmatpush1.msra.mxu0 %v264
    %298 = vmatprep.subr.mxu0 0.0
    %299 = vmatpush1.msra.mxu0 %v263
    %300 = vmatprep.subr.mxu0 0.0
    %301 = vmatpush1.msra.mxu0 %v262
    %302 = vmatprep.subr.mxu0 0.0
    %303 = vmatpush1.msra.mxu0 %v261
    %304 = vmatprep.subr.mxu0 0.0
    %305 = vmatpush1.msra.mxu0 %v260
    %306 = vmatprep.subr.mxu0 0.0
    %307 = vmatpush1.msra.mxu0 %v259
    %308 = vmatprep.subr.mxu0 0.0
    %309 = vmatpush1.msra.mxu0 %v258
    %310 = vmatprep.subr.mxu0 0.0
    %311 = vmatpush1.msra.mxu0 %v257
    %312 = vmatprep.subr.mxu0 0.0
    %313 = vmatpush2.msra.mxu0 0.0
    %314 = vmatprep.subr.mxu0 0.0
    %315 = vmatpush2.msra.mxu0 0.0
    %316 = vmatprep.subr.mxu0 0.0
    %317 = vmatpush2.msra.mxu0 0.0
    %318 = vmatprep.subr.mxu0 0.0
    %319 = vmatpush2.msra.mxu0 0.0
    %320 = vmatprep.subr.mxu0 0.0
    %321 = vmatpush2.msra.mxu0 0.0
    %322 = vmatprep.subr.mxu0 0.0
    %323 = vmatpush2.msra.mxu0 0.0
    %324 = vmatprep.subr.mxu0 0.0
    %325 = vmatpush2.msra.mxu0 0.0
    %326 = vmatprep.subr.mxu0 0.0
    %327 = vmatpush2.msra.mxu0 0.0
    %328 = vmatprep.subr.mxu0 0.0
    %329 = vmatpush2.msra.mxu0 0.0
    %330 = vmatprep.subr.mxu0 0.0
    %331 = vmatpush2.msra.mxu0 0.0
    %332 = vmatprep.subr.mxu0 0.0
    %333 = vmatpush2.msra.mxu0 0.0
    %334 = vmatprep.subr.mxu0 0.0
    %335 = vmatpush2.msra.mxu0 0.0
    %336 = vmatprep.subr.mxu0 0.0
    %337 = vmatpush2.msra.mxu0 0.0
    %338 = vmatprep.subr.mxu0 0.0
    %339 = vmatpush2.msra.mxu0 0.0
    %340 = vmatprep.subr.mxu0 0.0
    %341 = vmatpush2.msra.mxu0 0.0
    %342 = vmatprep.subr.mxu0 0.0
    %343 = vmatpush2.msra.mxu0 0.0
    %344 = vmatprep.mubr.f32.mxu0 0.0
    %345 = vmatmul.mubr.f32.gmra.mxu0 %v256
    %v346 = vpop.f32.mrf.mxu0
    %v347 = vadd.f32 %v278, %v346
    %v348 = vpop.f32.mrf.mxu0
    %349 = vdwg.mxu0
    %350 = vxpose.xlu0.b32.start [1/16] %v347, 128
    %351 = vxpose.xlu0.b32.cont [2/16] 0.0, 128
    %352 = vxpose.xlu0.b32.cont [3/16] 0.0, 128
    %353 = vxpose.xlu0.b32.cont [4/16] 0.0, 128
    %354 = vxpose.xlu0.b32.cont [5/16] 0.0, 128
    %355 = vxpose.xlu0.b32.cont [6/16] 0.0, 128
    %356 = vxpose.xlu0.b32.cont [7/16] 0.0, 128
    %357 = vxpose.xlu0.b32.cont [8/16] 0.0, 128
    %358 = vxpose.xlu0.b32.cont [9/16] 0.0, 128
    %359 = vxpose.xlu0.b32.cont [10/16] 0.0, 128
    %360 = vxpose.xlu0.b32.cont [11/16] 0.0, 128
    %361 = vxpose.xlu0.b32.cont [12/16] 0.0, 128
    %362 = vxpose.xlu0.b32.cont [13/16] 0.0, 128
    %363 = vxpose.xlu0.b32.cont [14/16] 0.0, 128
    %364 = vxpose.xlu0.b32.cont [15/16] 0.0, 128
    %365 = vxpose.xlu0.b32.end [16/16] 0.0, 128
    %v366 = vpop.trf.xlu0
    %v367 = vpop.trf.xlu0
    %v368 = vpop.trf.xlu0
    %v369 = vpop.trf.xlu0
    %v370 = vpop.trf.xlu0
    %v371 = vpop.trf.xlu0
    %v372 = vpop.trf.xlu0
    %v373 = vpop.trf.xlu0
    %v374 = vpop.trf.xlu0
    %v375 = vpop.trf.xlu0
    %v376 = vpop.trf.xlu0
    %v377 = vpop.trf.xlu0
    %v378 = vpop.trf.xlu0
    %v379 = vpop.trf.xlu0
    %v380 = vpop.trf.xlu0
    %v381 = vpop.trf.xlu0
    %vm382 = vcmask 57344
    %383 = vst.msk [vmem:[#allocation8] sm:$0x1] %vm382, %v366
    // Predicated region
    $region42: #{fused_mlp_forward.1} parent=1 // pred_check
      _
    $region43: #{fused_mlp_forward.1} parent=1 // pred_check_branch
      %385 = sbr.rel (0) target = $region45
    $region44: #{fused_mlp_forward.1} parent=1 // pred_region
      %s387 = ssub.s32 16, 16
      %388 = vsyncadd [#allocation4], %s387
      %s390 = sshll.u32 [#allocation8], 4
      %s391 = int_to_ptr.vmem [resolvable:$true] %s390
      %393 = dma.vmem_to_hbm [thread:$0]  %s391, 16, %s7, [#allocation4]
    $region45: #{fused_mlp_forward.1} parent=1 // pred_fallthru
      _
    // Predicated region
    $region46: #{fused_mlp_forward.1} parent=1 // pred_check
      _
    $region47: #{fused_mlp_forward.1} parent=1 // pred_check_branch
      %395 = sbr.rel (0) target = $region49
    $region48: #{fused_mlp_forward.1} parent=1 // pred_region
      %396 = dma.done [#allocation4], 16
    $region49: #{fused_mlp_forward.1} parent=1 // pred_fallthru
      _
    %397 = vsyncpa [#allocation3], 1
    %398 = vsyncpa [#allocation6], 1
    %399 = vsyncpa [#allocation4], 1

</llo_original>
